<compile_context>
chip_gen: v5e
topology: v5e:2x2
jax: 0.10.0
libtpu: 0.0.40
codegen_flags: <defaults>
</compile_context>

<pallas_src>
import functools

import jax
import jax.numpy as jnp
from jax.experimental import pallas as pl
from jax.experimental.pallas import tpu as pltpu

_BN_EPS = 1e-5
_MXU_DTYPE = jnp.bfloat16   # MXU operand dtype; elementwise math stays f32


# ----------------------------------------------------------------------------
# Fused forward kernel (single invocation, full arrays resident in VMEM).
# ----------------------------------------------------------------------------
def _make_fused_kernel(n_hidden, e2_rows):
    def kernel(e12_ref, a_ref, x_ref, wev_ref, *rest):
        # rest = (*hidden_weight_refs, b_hidden_ref, w_last_ref, b_last_ref, out_ref)
        w_h_refs = rest[:n_hidden]
        b_h_ref = rest[n_hidden]
        w_last_ref = rest[n_hidden + 1]
        b_last_ref = rest[n_hidden + 2]
        out_ref = rest[n_hidden + 3]

        a = a_ref[...]                       # (N, N) bf16 normalized adjacency
        h = x_ref[...]                       # (N, C) f32 node features

        # Two EvolveGCN-O layers: relu(A @ (h @ W_ev)); dropout = identity (eval).
        for layer in range(2):
            w_ev = wev_ref[layer]            # (C, C) bf16 evolved GCN weight
            xw = jnp.dot(h.astype(_MXU_DTYPE), w_ev,
                         preferred_element_type=jnp.float32)
            h = jnp.dot(a, xw.astype(_MXU_DTYPE),
                        preferred_element_type=jnp.float32)
            h = jnp.maximum(h, 0.0)

        # In-kernel gather of both edge endpoints with ONE one-hot matmul (MXU;
        # node features never leave VMEM).  e12_ref stacks [edge1; edge2].
        n_nodes = a_ref.shape[0]
        node_ids = jax.lax.broadcasted_iota(jnp.int32, (2 * e2_rows, n_nodes), 1)
        oh = jnp.where(node_ids == e12_ref[...], 1.0, 0.0).astype(_MXU_DTYPE)
        g = jnp.dot(oh, h.astype(_MXU_DTYPE), preferred_element_type=jnp.float32)
        x = g[:e2_rows] * g[e2_rows:]        # X[edge1] * X[edge2]

        # MLP head: eval-mode BatchNorm already folded into W/b in the wrapper.
        b_h = b_h_ref[...]                   # (n_hidden, H) f32, stacked biases
        for l in range(n_hidden):
            x = jnp.dot(x.astype(_MXU_DTYPE), w_h_refs[l][...],
                        preferred_element_type=jnp.float32) + b_h[l:l + 1, :]
            x = jnp.maximum(x, 0.0)
        logits = jnp.dot(x.astype(_MXU_DTYPE), w_last_ref[...],
                         preferred_element_type=jnp.float32) + b_last_ref[...]

        # Stabilized log_softmax over classes.
        mx = jnp.max(logits, axis=-1, keepdims=True)
        shifted = logits - mx
        lse = jnp.log(jnp.sum(jnp.exp(shifted), axis=-1, keepdims=True))
        out_ref[...] = shifted - lse

    return kernel


# ----------------------------------------------------------------------------
# Wrapper-side (trace-time / constant-foldable) param math.
# ----------------------------------------------------------------------------
def _evolve_weight(w0, wih, whh, bih, bhh):
    """PyTorch GRU one-step with x = h = W0 (gate order [r, z, n])."""
    c = w0.shape[0]
    gi = w0 @ wih.T + bih
    gh = w0 @ whh.T + bhh
    r = jax.nn.sigmoid(gi[:, :c] + gh[:, :c])
    z = jax.nn.sigmoid(gi[:, c:2 * c] + gh[:, c:2 * c])
    n = jnp.tanh(gi[:, 2 * c:] + r * gh[:, 2 * c:])
    return (1.0 - z) * n + z * w0


def _fold_bn(w, b, gamma, beta, mean, var):
    """Fold eval-mode BatchNorm1d (running stats) into the preceding Linear."""
    scale = gamma * jax.lax.rsqrt(var + _BN_EPS)
    return w * scale[:, None], (b - mean) * scale + beta


def build_norm_adj(edge_index, edge_weight, num_nodes):
    """Dense sym-normalized adjacency matching PyG gcn_norm with
    add_remaining_self_loops: existing self-loops keep their weight; every node gets
    exactly one self-loop (weight 1 if it had none)."""
    row, col = edge_index[0], edge_index[1]
    is_loop = row == col
    w_kept = jnp.where(is_loop, 0.0, edge_weight)
    loop_w = jnp.ones((num_nodes,), edge_weight.dtype)
    loop_w = loop_w.at[jnp.where(is_loop, row, num_nodes)].set(edge_weight, mode="drop")
    deg = jnp.zeros((num_nodes,), edge_weight.dtype).at[col].add(w_kept) + loop_w
    dis = jnp.where(deg > 0, jax.lax.rsqrt(deg), 0.0)
    norm = dis[row] * w_kept * dis[col]
    # out[i] = sum_{e=(j->i)} norm_e * x[j]  =>  A[i, j] accumulates norm
    A = jnp.zeros((num_nodes, num_nodes), edge_weight.dtype).at[col, row].add(norm)
    return A + jnp.diag(dis * loop_w * dis)


def gcn_edge_classifier_forward(X, edge_index, edge_weight, edge1, edge2, params):
    N = X.shape[0]
    E2 = edge1.shape[0]
    num_class = params["num_class"]

    # Plain-JAX glue. A depends on runtime edges; everything param-only below is
    # constant-folded under jit (params are bound as compile-time constants).
    A = build_norm_adj(edge_index, edge_weight, N).astype(_MXU_DTYPE)
    w_ev = jnp.stack([_evolve_weight(*lp)
                      for lp in params["gcn_layers"]]).astype(_MXU_DTYPE)

    w_h_t, b_h = [], []
    for layer in params["mlp_hidden"]:
        w_f, b_f = _fold_bn(*layer)
        w_h_t.append(w_f.T.astype(_MXU_DTYPE))
        b_h.append(b_f)
    b_h = jnp.stack(b_h).astype(jnp.float32)           # (n_hidden, H)
    w_last, b_last = params["mlp_final"]

    e12 = jnp.concatenate([edge1, edge2]).reshape(2 * E2, 1).astype(jnp.int32)

    inputs = [e12,
              A, X.astype(jnp.float32), w_ev,
              *w_h_t, b_h,
              w_last.T.astype(_MXU_DTYPE),
              b_last.reshape(1, num_class).astype(jnp.float32)]

    vmem = pl.BlockSpec(memory_space=pltpu.MemorySpace.VMEM)
    # TODO(synk): for large N/E2 add a row-tiled grid ("parallel" axis so v7x's 2 TCs
    # share it) + vmem_limit_bytes; at these sizes a single full-array block is best.
    return pl.pallas_call(
        _make_fused_kernel(len(w_h_t), E2),
        out_shape=jax.ShapeDtypeStruct((E2, num_class), jnp.float32),
        in_specs=[vmem] * len(inputs),
        out_specs=vmem,
    )(*inputs)


# ----------------------------------------------------------------------------
# Pure-JAX f32 reference (eval mode) for correctness checking.
# ----------------------------------------------------------------------------
def reference_forward(X, edge_index, edge_weight, edge1, edge2, params):
    N = X.shape[0]
    A = build_norm_adj(edge_index, edge_weight, N)
    h = X
    for lp in params["gcn_layers"]:
        h = jnp.maximum(A @ (h @ _evolve_weight(*lp)), 0.0)
    x = h[edge1] * h[edge2]
    for (w, b, gamma, beta, mean, var) in params["mlp_hidden"]:
        x = x @ w.T + b
        x = (x - mean) * jax.lax.rsqrt(var + _BN_EPS) * gamma + beta
        x = jnp.maximum(x, 0.0)
    w_last, b_last = params["mlp_final"]
    return jax.nn.log_softmax(x @ w_last.T + b_last, axis=-1)


# ----------------------------------------------------------------------------
# Deterministic parameter initialization (synthetic; matches module shapes).
# ----------------------------------------------------------------------------
def _uniform(key, shape, bound):
    return jax.random.uniform(key, shape, jnp.float32, -bound, bound)


def init_params(key, in_channel, hidden, num_layer, num_class):
    keys = iter(jax.random.split(key, 64))
    params = {"num_class": num_class}

    # Two EvolveGCNO layers: initial weight (C,C) + GRU(C -> C) params.
    gcn_layers = []
    for _ in range(2):
        glorot = (6.0 / (in_channel + in_channel)) ** 0.5
        w0 = _uniform(next(keys), (in_channel, in_channel), glorot)
        gru_bound = 1.0 / (in_channel ** 0.5)
        wih = _uniform(next(keys), (3 * in_channel, in_channel), gru_bound)
        whh = _uniform(next(keys), (3 * in_channel, in_channel), gru_bound)
        bih = _uniform(next(keys), (3 * in_channel,), gru_bound)
        bhh = _uniform(next(keys), (3 * in_channel,), gru_bound)
        gcn_layers.append((w0, wih, whh, bih, bhh))
    params["gcn_layers"] = gcn_layers

    # MLP head: Linear(C,H), [Linear(H,H)]*(num_layer-2), Linear(H,num_class);
    # each hidden Linear followed by BatchNorm1d (running stats: mean=0, var=1).
    dims = [in_channel] + [hidden] * (num_layer - 1)
    hidden_layers = []
    for i in range(num_layer - 1):
        fan_in = dims[i]
        bound = 1.0 / (fan_in ** 0.5)
        w = _uniform(next(keys), (dims[i + 1], fan_in), bound)
        b = _uniform(next(keys), (dims[i + 1],), bound)
        gamma = jnp.ones((dims[i + 1],), jnp.float32)
        beta = jnp.zeros((dims[i + 1],), jnp.float32)
        mean = jnp.zeros((dims[i + 1],), jnp.float32)
        var = jnp.ones((dims[i + 1],), jnp.float32)
        hidden_layers.append((w, b, gamma, beta, mean, var))
    params["mlp_hidden"] = hidden_layers

    bound = 1.0 / (hidden ** 0.5)
    w_last = _uniform(next(keys), (num_class, hidden), bound)
    b_last = _uniform(next(keys), (num_class,), bound)
    params["mlp_final"] = (w_last, b_last)
    return params


if __name__ == "__main__":
    N, C, E, E2 = 32, 16, 64, 48          # nodes, inChannel, graph edges, query edges
    HIDDEN, NUM_LAYER, NUM_CLASS = 32, 3, 4

    key = jax.random.PRNGKey(0)
    k_x, k_ei, k_ew, k_e1, k_e2, k_p = jax.random.split(key, 6)

    X = jax.random.normal(k_x, (N, C), jnp.float32)
    edge_index = jax.random.randint(k_ei, (2, E), 0, N, jnp.int32)
    edge_weight = jax.random.uniform(k_ew, (E,), jnp.float32, 0.1, 1.0)
    edge1 = jax.random.randint(k_e1, (E2,), 0, N, jnp.int32)
    edge2 = jax.random.randint(k_e2, (E2,), 0, N, jnp.int32)

    params = init_params(k_p, C, HIDDEN, NUM_LAYER, NUM_CLASS)

    fwd = jax.jit(functools.partial(gcn_edge_classifier_forward, params=params))
    out = jax.block_until_ready(fwd(X, edge_index, edge_weight, edge1, edge2))

    ref = reference_forward(X, edge_index, edge_weight, edge1, edge2, params)

    assert out.shape == (E2, NUM_CLASS)
    assert bool(jnp.all(jnp.isfinite(out)))
    # rows of exp(log_softmax) should sum to ~1
    assert bool(jnp.allclose(jnp.sum(jnp.exp(out), axis=-1), 1.0, atol=1e-3))
    # match the pure-JAX f32 reference (bf16 MXU operands -> loose tolerance)
    assert bool(jnp.allclose(out, ref, atol=1e-1, rtol=1e-1)), \
        float(jnp.max(jnp.abs(out - ref)))
    print("KERNEL_OK")
</pallas_src>

<mosaic_0001>
module attributes {stable_mosaic.version = 11 : i64} {
  func.func @kernel(%arg0: memref<96x1xi32, #tpu.memory_space<vmem>>, %arg1: memref<32x32xbf16, #tpu.memory_space<vmem>>, %arg2: memref<32x16xf32, #tpu.memory_space<vmem>>, %arg3: memref<2x16x16xbf16, #tpu.memory_space<vmem>>, %arg4: memref<16x32xbf16, #tpu.memory_space<vmem>>, %arg5: memref<32x32xbf16, #tpu.memory_space<vmem>>, %arg6: memref<2x32xf32, #tpu.memory_space<vmem>>, %arg7: memref<32x4xbf16, #tpu.memory_space<vmem>>, %arg8: memref<1x4xf32, #tpu.memory_space<vmem>>, %arg9: memref<48x4xf32, #tpu.memory_space<vmem>>) attributes {dimension_semantics = [], scalar_prefetch = 0 : i64, scratch_operands = 0 : i64, tpu.core_type = #tpu.core_type<tc>} {
    %c0 = arith.constant 0 : index
    %c0_0 = arith.constant 0 : index
    %0 = vector.load %arg1[%c0, %c0_0] : memref<32x32xbf16, #tpu.memory_space<vmem>>, vector<32x32xbf16>
    %c0_1 = arith.constant 0 : index
    %c0_2 = arith.constant 0 : index
    %1 = vector.load %arg2[%c0_1, %c0_2] : memref<32x16xf32, #tpu.memory_space<vmem>>, vector<32x16xf32>
    %c0_3 = arith.constant 0 : index
    %c0_4 = arith.constant 0 : index
    %c0_5 = arith.constant 0 : index
    %2 = vector.load %arg3[%c0_3, %c0_4, %c0_5] : memref<2x16x16xbf16, #tpu.memory_space<vmem>>, vector<1x16x16xbf16>
    %3 = vector.shape_cast %2 : vector<1x16x16xbf16> to vector<16x16xbf16>
    %4 = arith.truncf %1 : vector<32x16xf32> to vector<32x16xbf16>
    %cst = arith.constant dense<0.000000e+00> : vector<32x16xf32>
    %5 = tpu.matmul %4, %3, %cst {dimension_numbers = #tpu.dot_dimension_numbers<[1], [0], [0], [1], [0, 0, 1, 1], [], []>} : vector<32x16xbf16>, vector<16x16xbf16>, vector<32x16xf32> -> vector<32x16xf32>
    %6 = arith.truncf %5 : vector<32x16xf32> to vector<32x16xbf16>
    %cst_6 = arith.constant dense<0.000000e+00> : vector<32x16xf32>
    %7 = tpu.matmul %0, %6, %cst_6 {dimension_numbers = #tpu.dot_dimension_numbers<[1], [0], [0], [1], [0, 0, 1, 1], [], []>} : vector<32x32xbf16>, vector<32x16xbf16>, vector<32x16xf32> -> vector<32x16xf32>
    %cst_7 = arith.constant 0.000000e+00 : f32
    %8 = vector.broadcast %cst_7 : f32 to vector<32x16xf32>
    %9 = arith.maximumf %7, %8 : vector<32x16xf32>
    %c1 = arith.constant 1 : index
    %c0_8 = arith.constant 0 : index
    %c0_9 = arith.constant 0 : index
    %10 = vector.load %arg3[%c1, %c0_8, %c0_9] : memref<2x16x16xbf16, #tpu.memory_space<vmem>>, vector<1x16x16xbf16>
    %11 = vector.shape_cast %10 : vector<1x16x16xbf16> to vector<16x16xbf16>
    %12 = arith.truncf %9 : vector<32x16xf32> to vector<32x16xbf16>
    %cst_10 = arith.constant dense<0.000000e+00> : vector<32x16xf32>
    %13 = tpu.matmul %12, %11, %cst_10 {dimension_numbers = #tpu.dot_dimension_numbers<[1], [0], [0], [1], [0, 0, 1, 1], [], []>} : vector<32x16xbf16>, vector<16x16xbf16>, vector<32x16xf32> -> vector<32x16xf32>
    %14 = arith.truncf %13 : vector<32x16xf32> to vector<32x16xbf16>
    %cst_11 = arith.constant dense<0.000000e+00> : vector<32x16xf32>
    %15 = tpu.matmul %0, %14, %cst_11 {dimension_numbers = #tpu.dot_dimension_numbers<[1], [0], [0], [1], [0, 0, 1, 1], [], []>} : vector<32x32xbf16>, vector<32x16xbf16>, vector<32x16xf32> -> vector<32x16xf32>
    %cst_12 = arith.constant 0.000000e+00 : f32
    %16 = vector.broadcast %cst_12 : f32 to vector<32x16xf32>
    %17 = arith.maximumf %15, %16 : vector<32x16xf32>
    %18 = tpu.iota {dimensions = array<i32: 1>} : vector<96x32xi32>
    %c0_13 = arith.constant 0 : index
    %c0_14 = arith.constant 0 : index
    %19 = vector.load %arg0[%c0_13, %c0_14] : memref<96x1xi32, #tpu.memory_space<vmem>>, vector<96x1xi32>
    %20 = vector.broadcast %19 : vector<96x1xi32> to vector<96x32xi32>
    %21 = arith.cmpi eq, %18, %20 : vector<96x32xi32>
    %cst_15 = arith.constant 1.000000e+00 : f32
    %cst_16 = arith.constant 0.000000e+00 : f32
    %22 = vector.broadcast %cst_15 : f32 to vector<96x32xf32>
    %23 = vector.broadcast %cst_16 : f32 to vector<96x32xf32>
    %24 = arith.select %21, %22, %23 : vector<96x32xi1>, vector<96x32xf32>
    %25 = arith.truncf %24 : vector<96x32xf32> to vector<96x32xbf16>
    %26 = arith.truncf %17 : vector<32x16xf32> to vector<32x16xbf16>
    %cst_17 = arith.constant dense<0.000000e+00> : vector<96x16xf32>
    %27 = tpu.matmul %25, %26, %cst_17 {dimension_numbers = #tpu.dot_dimension_numbers<[1], [0], [0], [1], [0, 0, 1, 1], [], []>} : vector<96x32xbf16>, vector<32x16xbf16>, vector<96x16xf32> -> vector<96x16xf32>
    %28 = vector.extract_strided_slice %27 {offsets = [0, 0], sizes = [48, 16], strides = [1, 1]} : vector<96x16xf32> to vector<48x16xf32>
    %29 = vector.extract_strided_slice %27 {offsets = [48, 0], sizes = [48, 16], strides = [1, 1]} : vector<96x16xf32> to vector<48x16xf32>
    %30 = arith.mulf %28, %29 : vector<48x16xf32>
    %c0_18 = arith.constant 0 : index
    %c0_19 = arith.constant 0 : index
    %31 = vector.load %arg6[%c0_18, %c0_19] : memref<2x32xf32, #tpu.memory_space<vmem>>, vector<2x32xf32>
    %32 = arith.truncf %30 : vector<48x16xf32> to vector<48x16xbf16>
    %c0_20 = arith.constant 0 : index
    %c0_21 = arith.constant 0 : index
    %33 = vector.load %arg4[%c0_20, %c0_21] : memref<16x32xbf16, #tpu.memory_space<vmem>>, vector<16x32xbf16>
    %cst_22 = arith.constant dense<0.000000e+00> : vector<48x32xf32>
    %34 = tpu.matmul %32, %33, %cst_22 {dimension_numbers = #tpu.dot_dimension_numbers<[1], [0], [0], [1], [0, 0, 1, 1], [], []>} : vector<48x16xbf16>, vector<16x32xbf16>, vector<48x32xf32> -> vector<48x32xf32>
    %35 = vector.extract_strided_slice %31 {offsets = [0, 0], sizes = [1, 32], strides = [1, 1]} : vector<2x32xf32> to vector<1x32xf32>
    %36 = vector.broadcast %35 : vector<1x32xf32> to vector<48x32xf32>
    %37 = arith.addf %34, %36 : vector<48x32xf32>
    %cst_23 = arith.constant 0.000000e+00 : f32
    %38 = vector.broadcast %cst_23 : f32 to vector<48x32xf32>
    %39 = arith.maximumf %37, %38 : vector<48x32xf32>
    %40 = arith.truncf %39 : vector<48x32xf32> to vector<48x32xbf16>
    %c0_24 = arith.constant 0 : index
    %c0_25 = arith.constant 0 : index
    %41 = vector.load %arg5[%c0_24, %c0_25] : memref<32x32xbf16, #tpu.memory_space<vmem>>, vector<32x32xbf16>
    %cst_26 = arith.constant dense<0.000000e+00> : vector<48x32xf32>
    %42 = tpu.matmul %40, %41, %cst_26 {dimension_numbers = #tpu.dot_dimension_numbers<[1], [0], [0], [1], [0, 0, 1, 1], [], []>} : vector<48x32xbf16>, vector<32x32xbf16>, vector<48x32xf32> -> vector<48x32xf32>
    %43 = vector.extract_strided_slice %31 {offsets = [1, 0], sizes = [1, 32], strides = [1, 1]} : vector<2x32xf32> to vector<1x32xf32>
    %44 = vector.broadcast %43 : vector<1x32xf32> to vector<48x32xf32>
    %45 = arith.addf %42, %44 : vector<48x32xf32>
    %cst_27 = arith.constant 0.000000e+00 : f32
    %46 = vector.broadcast %cst_27 : f32 to vector<48x32xf32>
    %47 = arith.maximumf %45, %46 : vector<48x32xf32>
    %48 = arith.truncf %47 : vector<48x32xf32> to vector<48x32xbf16>
    %c0_28 = arith.constant 0 : index
    %c0_29 = arith.constant 0 : index
    %49 = vector.load %arg7[%c0_28, %c0_29] : memref<32x4xbf16, #tpu.memory_space<vmem>>, vector<32x4xbf16>
    %cst_30 = arith.constant dense<0.000000e+00> : vector<48x4xf32>
    %50 = tpu.matmul %48, %49, %cst_30 {dimension_numbers = #tpu.dot_dimension_numbers<[1], [0], [0], [1], [0, 0, 1, 1], [], []>} : vector<48x32xbf16>, vector<32x4xbf16>, vector<48x4xf32> -> vector<48x4xf32>
    %c0_31 = arith.constant 0 : index
    %c0_32 = arith.constant 0 : index
    %51 = vector.load %arg8[%c0_31, %c0_32] : memref<1x4xf32, #tpu.memory_space<vmem>>, vector<1x4xf32>
    %52 = vector.broadcast %51 : vector<1x4xf32> to vector<48x4xf32>
    %53 = arith.addf %50, %52 : vector<48x4xf32>
    %cst_33 = arith.constant dense<0xFF800000> : vector<48xf32>
    %54 = vector.multi_reduction <maximumf>, %53, %cst_33 [1] : vector<48x4xf32> to vector<48xf32>
    %55 = vector.shape_cast %54 : vector<48xf32> to vector<48x1xf32>
    %56 = vector.broadcast %55 : vector<48x1xf32> to vector<48x4xf32>
    %57 = arith.subf %53, %56 : vector<48x4xf32>
    %58 = math.exp %57 : vector<48x4xf32>
    %cst_34 = arith.constant dense<0.000000e+00> : vector<48xf32>
    %59 = vector.multi_reduction <add>, %58, %cst_34 [1] : vector<48x4xf32> to vector<48xf32>
    %60 = vector.shape_cast %59 : vector<48xf32> to vector<48x1xf32>
    %61 = math.log %60 : vector<48x1xf32>
    %62 = vector.broadcast %61 : vector<48x1xf32> to vector<48x4xf32>
    %63 = arith.subf %57, %62 : vector<48x4xf32>
    %c0_35 = arith.constant 0 : index
    %c0_36 = arith.constant 0 : index
    %64 = vector.load %arg9[%c0_35, %c0_36] : memref<48x4xf32, #tpu.memory_space<vmem>>, vector<48x4xf32>
    tpu.vector_store %arg9[%c0_35, %c0_36], %63 {strides = array<i32>} : memref<48x4xf32, #tpu.memory_space<vmem>>, vector<48x4xf32>,
    return
  }
}

</mosaic_0001>

<llo_original>
// kernel: gcn_edge_classifier_forward.1
$region0: #{gcn_edge_classifier_forward.1}
  #allocation0 [shape = 'u32[]', space=smem, size = 0x4, offset = 0x4, fixed_abs, tag = 'smem constant byte address 0x4 - core index']
  #allocation1 [shape = 'u32[72,128]{1,0:T(1,128)}', space=vmem, size = 0x9000, scoped, tag = 'internal scratch']
  %s0 = inlined_call_operand.vmem [shape: s32[96,1], index: 0, kind: input, shape index: {}]
  %s1 = inlined_call_operand.vmem [shape: bf16[32,32], index: 1, kind: input, shape index: {}]
  %s2 = inlined_call_operand.vmem [shape: f32[32,16], index: 2, kind: input, shape index: {}]
  %s3 = inlined_call_operand.vmem [shape: bf16[2,16,16], index: 3, kind: input, shape index: {}]
  %s4 = inlined_call_operand.vmem [shape: bf16[16,32], index: 4, kind: input, shape index: {}]
  %s5 = inlined_call_operand.vmem [shape: bf16[32,32], index: 5, kind: input, shape index: {}]
  %s6 = inlined_call_operand.vmem [shape: f32[2,32], index: 6, kind: input, shape index: {}]
  %s7 = inlined_call_operand.vmem [shape: bf16[32,4], index: 7, kind: input, shape index: {}]
  %s8 = inlined_call_operand.vmem [shape: f32[1,4], index: 8, kind: input, shape index: {}]
  %s9 = inlined_call_operand.vmem [shape: f32[48,4], index: 9, kind: output, shape index: {}]
  %s10 = sld [smem:[#allocation0]]
  $region46: #{gcn_edge_classifier_forward.1} parent=0
    _
  %s12 = ssub.s32 1, %s10
  %s13 = scalar_select 0, %s12, %s10
  // Predicated region
  $region2: #{gcn_edge_classifier_forward.1} parent=0 // pred_check
    _
  $region3: #{gcn_edge_classifier_forward.1} parent=0 // pred_check_branch
    %15 = sbr.rel (0) target = $region5
  $region4: #{gcn_edge_classifier_forward.1} parent=0 // pred_region
    _
  $region5: #{gcn_edge_classifier_forward.1} parent=0 // pred_fallthru
    _
  // Predicated region
  $region6: #{gcn_edge_classifier_forward.1} parent=0 // pred_check
    _
  $region7: #{gcn_edge_classifier_forward.1} parent=0 // pred_check_branch
    %17 = sbr.rel (0) target = $region9
  $region8: #{gcn_edge_classifier_forward.1} parent=0 // pred_region
    _
  $region9: #{gcn_edge_classifier_forward.1} parent=0 // pred_fallthru
    _
  // Predicated region
  $region10: #{gcn_edge_classifier_forward.1} parent=0 // pred_check
    _
  $region11: #{gcn_edge_classifier_forward.1} parent=0 // pred_check_branch
    %19 = sbr.rel (0) target = $region13
  $region12: #{gcn_edge_classifier_forward.1} parent=0 // pred_region
    _
  $region13: #{gcn_edge_classifier_forward.1} parent=0 // pred_fallthru
    _
  // Predicated region
  $region14: #{gcn_edge_classifier_forward.1} parent=0 // pred_check
    _
  $region15: #{gcn_edge_classifier_forward.1} parent=0 // pred_check_branch
    %21 = sbr.rel (0) target = $region17
  $region16: #{gcn_edge_classifier_forward.1} parent=0 // pred_region
    _
  $region17: #{gcn_edge_classifier_forward.1} parent=0 // pred_fallthru
    _
  // Predicated region
  $region18: #{gcn_edge_classifier_forward.1} parent=0 // pred_check
    _
  $region19: #{gcn_edge_classifier_forward.1} parent=0 // pred_check_branch
    %23 = sbr.rel (0) target = $region21
  $region20: #{gcn_edge_classifier_forward.1} parent=0 // pred_region
    _
  $region21: #{gcn_edge_classifier_forward.1} parent=0 // pred_fallthru
    _
  // Predicated region
  $region22: #{gcn_edge_classifier_forward.1} parent=0 // pred_check
    _
  $region23: #{gcn_edge_classifier_forward.1} parent=0 // pred_check_branch
    %25 = sbr.rel (0) target = $region25
  $region24: #{gcn_edge_classifier_forward.1} parent=0 // pred_region
    _
  $region25: #{gcn_edge_classifier_forward.1} parent=0 // pred_fallthru
    _
  // Predicated region
  $region26: #{gcn_edge_classifier_forward.1} parent=0 // pred_check
    _
  $region27: #{gcn_edge_classifier_forward.1} parent=0 // pred_check_branch
    %27 = sbr.rel (0) target = $region29
  $region28: #{gcn_edge_classifier_forward.1} parent=0 // pred_region
    _
  $region29: #{gcn_edge_classifier_forward.1} parent=0 // pred_fallthru
    _
  // Predicated region
  $region30: #{gcn_edge_classifier_forward.1} parent=0 // pred_check
    _
  $region31: #{gcn_edge_classifier_forward.1} parent=0 // pred_check_branch
    %29 = sbr.rel (0) target = $region33
  $region32: #{gcn_edge_classifier_forward.1} parent=0 // pred_region
    _
  $region33: #{gcn_edge_classifier_forward.1} parent=0 // pred_fallthru
    _
  // Predicated region
  $region34: #{gcn_edge_classifier_forward.1} parent=0 // pred_check
    _
  $region35: #{gcn_edge_classifier_forward.1} parent=0 // pred_check_branch
    %31 = sbr.rel (0) target = $region37
  $region36: #{gcn_edge_classifier_forward.1} parent=0 // pred_region
    _
  $region37: #{gcn_edge_classifier_forward.1} parent=0 // pred_fallthru
    _
  %v33 = vld [vmem:[%s1] sm:$0xf]
  %v34 = vld [vmem:[%s1 + $0x4] sm:$0xf]
  %v35 = vld [vmem:[%s1 + $0x8] sm:$0xf]
  %v36 = vld [vmem:[%s1 + $0xc] sm:$0xf]
  %v37 = vld [vmem:[%s2] sm:$0xff]
  %v38 = vld [vmem:[%s2 + $0x8] sm:$0xff]
  %v39 = vld [vmem:[%s2 + $0x10] sm:$0xff]
  %v40 = vld [vmem:[%s2 + $0x18] sm:$0xff]
  %v41 = vld [vmem:[%s3] sm:$0xf]
  %v42 = vld [vmem:[%s3 + $0x4] sm:$0xf]
  %v43 = vpack.c.bf16 %v38, %v37
  %v44 = vpack.c.bf16 %v40, %v39
  %v47 = vunpack.c.l.b16 %v41
  %v48 = vunpack.c.l.b16 %v42
  %v49 = vpack.c.b16 %v48, %v47
  %vm51 = vcmask 130048
  %v53 = vsel %vm51, %v43, 0
  %v56 = vsel %vm51, %v44, 0
  %58 = vmatpush.bf16.msra.mxu0 0
  %59 = vmatpush.bf16.msra.mxu0 0
  %60 = vmatpush.bf16.msra.mxu0 0
  %61 = vmatpush.bf16.msra.mxu0 0
  %62 = vmatpush.bf16.msra.mxu0 0
  %63 = vmatpush.bf16.msra.mxu0 0
  %64 = vmatpush.bf16.msra.mxu0 0
  %65 = vmatpush.bf16.msra.mxu0 %v49
  %66 = vmatmul.bf16.gmra.mxu0 %v53
  %v67 = vpop.f32.mrf.mxu0
  %v68 = vadd.f32 0.0, %v67
  %v69 = vpop.f32.mrf.mxu0
  %v70 = vadd.f32 0.0, %v69
  %71 = vmatmul.bf16.gmra.mxu0 %v56
  %v72 = vpop.f32.mrf.mxu0
  %v73 = vadd.f32 0.0, %v72
  %v74 = vpop.f32.mrf.mxu0
  %v75 = vadd.f32 0.0, %v74
  %76 = vdwg.mxu0
  %v77 = vpack.c.bf16 %v70, %v68
  %v78 = vpack.c.bf16 %v75, %v73
  %v83 = vunpack.c.l.b16 %v33
  %v84 = vunpack.c.l.b16 %v34
  %v85 = vunpack.c.l.b16 %v35
  %v86 = vunpack.c.l.b16 %v36
  %v87 = vpack.c.b16 %v84, %v83
  %v88 = vpack.c.b16 %v86, %v85
  %vm89 = vcmask 261120
  %v91 = vsel %vm89, %v87, 0
  %v94 = vsel %vm89, %v88, 0
  %96 = vmatpush.bf16.msra.mxu0 0
  %97 = vmatpush.bf16.msra.mxu0 0
  %98 = vmatpush.bf16.msra.mxu0 0
  %99 = vmatpush.bf16.msra.mxu0 0
  %100 = vmatpush.bf16.msra.mxu0 0
  %101 = vmatpush.bf16.msra.mxu0 0
  %102 = vmatpush.bf16.msra.mxu0 %v78
  %103 = vmatpush.bf16.msra.mxu0 %v77
  %104 = vmatmul.bf16.gmra.mxu0 %v91
  %v105 = vpop.f32.mrf.mxu0
  %v106 = vadd.f32 0.0, %v105
  %v107 = vpop.f32.mrf.mxu0
  %v108 = vadd.f32 0.0, %v107
  %109 = vmatmul.bf16.gmra.mxu0 %v94
  %v110 = vpop.f32.mrf.mxu0
  %v111 = vadd.f32 0.0, %v110
  %v112 = vpop.f32.mrf.mxu0
  %v113 = vadd.f32 0.0, %v112
  %114 = vdwg.mxu0
  %v115 = vmax.f32 %v106, 0.0
  %v116 = vmax.f32 %v108, 0.0
  %v117 = vmax.f32 %v111, 0.0
  %v118 = vmax.f32 %v113, 0.0
  %s119 = scalar_lea.vmem %s3, 8
  %v120 = vld [vmem:[%s119] sm:$0xf]
  %v121 = vld [vmem:[%s119 + $0x4] sm:$0xf]
  %v122 = vpack.c.bf16 %v116, %v115
  %v123 = vpack.c.bf16 %v118, %v117
  %v126 = vunpack.c.l.b16 %v120
  %v127 = vunpack.c.l.b16 %v121
  %v128 = vpack.c.b16 %v127, %v126
  %v131 = vsel %vm51, %v122, 0
  %v134 = vsel %vm51, %v123, 0
  %136 = vmatpush.bf16.msra.mxu0 0
  %137 = vmatpush.bf16.msra.mxu0 0
  %138 = vmatpush.bf16.msra.mxu0 0
  %139 = vmatpush.bf16.msra.mxu0 0
  %140 = vmatpush.bf16.msra.mxu0 0
  %141 = vmatpush.bf16.msra.mxu0 0
  %142 = vmatpush.bf16.msra.mxu0 0
  %143 = vmatpush.bf16.msra.mxu0 %v128
  %144 = vmatmul.bf16.gmra.mxu0 %v131
  %v145 = vpop.f32.mrf.mxu0
  %v146 = vadd.f32 0.0, %v145
  %v147 = vpop.f32.mrf.mxu0
  %v148 = vadd.f32 0.0, %v147
  %149 = vmatmul.bf16.gmra.mxu0 %v134
  %v150 = vpop.f32.mrf.mxu0
  %v151 = vadd.f32 0.0, %v150
  %v152 = vpop.f32.mrf.mxu0
  %v153 = vadd.f32 0.0, %v152
  %154 = vdwg.mxu0
  %v155 = vpack.c.bf16 %v148, %v146
  %v156 = vpack.c.bf16 %v153, %v151
  %157 = vmatpush.bf16.msra.mxu0 0
  %158 = vmatpush.bf16.msra.mxu0 0
  %159 = vmatpush.bf16.msra.mxu0 0
  %160 = vmatpush.bf16.msra.mxu0 0
  %161 = vmatpush.bf16.msra.mxu0 0
  %162 = vmatpush.bf16.msra.mxu0 0
  %163 = vmatpush.bf16.msra.mxu0 %v156
  %164 = vmatpush.bf16.msra.mxu0 %v155
  %165 = vmatmul.bf16.gmra.mxu0 %v91
  %v166 = vpop.f32.mrf.mxu0
  %v167 = vadd.f32 0.0, %v166
  %v168 = vpop.f32.mrf.mxu0
  %v169 = vadd.f32 0.0, %v168
  %170 = vmatmul.bf16.gmra.mxu0 %v94
  %v171 = vpop.f32.mrf.mxu0
  %v172 = vadd.f32 0.0, %v171
  %v173 = vpop.f32.mrf.mxu0
  %v174 = vadd.f32 0.0, %v173
  %175 = vdwg.mxu0
  %v176 = vmax.f32 %v167, 0.0
  %v177 = vmax.f32 %v169, 0.0
  %v178 = vmax.f32 %v172, 0.0
  %v179 = vmax.f32 %v174, 0.0
  %v180 = vlaneseq
  %v181 = vand.u32 %v180, 127
  %v182 = vld [vmem:[%s0] sm:$0xff]
  %v183 = vld [vmem:[%s0 + $0x8] sm:$0xff]
  %v184 = vld [vmem:[%s0 + $0x10] sm:$0xff]
  %v185 = vld [vmem:[%s0 + $0x18] sm:$0xff]
  %v186 = vld [vmem:[%s0 + $0x20] sm:$0xff]
  %v187 = vld [vmem:[%s0 + $0x28] sm:$0xff]
  %v188 = vld [vmem:[%s0 + $0x30] sm:$0xff]
  %v189 = vld [vmem:[%s0 + $0x38] sm:$0xff]
  %v190 = vld [vmem:[%s0 + $0x40] sm:$0xff]
  %v191 = vld [vmem:[%s0 + $0x48] sm:$0xff]
  %v192 = vld [vmem:[%s0 + $0x50] sm:$0xff]
  %v193 = vld [vmem:[%s0 + $0x58] sm:$0xff]
  %194 = vset.pattern.permute.xlu0 0
  %195 = vperm.xlu0 %194, %v182
  %v196 = vpop.permute.xlu0 %195
  %197 = vset.pattern.permute.xlu0 0
  %198 = vperm.xlu0 %197, %v183
  %v199 = vpop.permute.xlu0 %198
  %200 = vset.pattern.permute.xlu0 0
  %201 = vperm.xlu0 %200, %v184
  %v202 = vpop.permute.xlu0 %201
  %203 = vset.pattern.permute.xlu0 0
  %204 = vperm.xlu0 %203, %v185
  %v205 = vpop.permute.xlu0 %204
  %206 = vset.pattern.permute.xlu0 0
  %207 = vperm.xlu0 %206, %v186
  %v208 = vpop.permute.xlu0 %207
  %209 = vset.pattern.permute.xlu0 0
  %210 = vperm.xlu0 %209, %v187
  %v211 = vpop.permute.xlu0 %210
  %212 = vset.pattern.permute.xlu0 0
  %213 = vperm.xlu0 %212, %v188
  %v214 = vpop.permute.xlu0 %213
  %215 = vset.pattern.permute.xlu0 0
  %216 = vperm.xlu0 %215, %v189
  %v217 = vpop.permute.xlu0 %216
  %218 = vset.pattern.permute.xlu0 0
  %219 = vperm.xlu0 %218, %v190
  %v220 = vpop.permute.xlu0 %219
  %221 = vset.pattern.permute.xlu0 0
  %222 = vperm.xlu0 %221, %v191
  %v223 = vpop.permute.xlu0 %222
  %224 = vset.pattern.permute.xlu0 0
  %225 = vperm.xlu0 %224, %v192
  %v226 = vpop.permute.xlu0 %225
  %227 = vset.pattern.permute.xlu0 0
  %228 = vperm.xlu0 %227, %v193
  %v229 = vpop.permute.xlu0 %228
  %vm230 = vcmp.eq.s32.totalorder %v181, %v196
  %vm231 = vcmp.eq.s32.totalorder %v181, %v199
  %vm232 = vcmp.eq.s32.totalorder %v181, %v202
  %vm233 = vcmp.eq.s32.totalorder %v181, %v205
  %vm234 = vcmp.eq.s32.totalorder %v181, %v208
  %vm235 = vcmp.eq.s32.totalorder %v181, %v211
  %vm236 = vcmp.eq.s32.totalorder %v181, %v214
  %vm237 = vcmp.eq.s32.totalorder %v181, %v217
  %vm238 = vcmp.eq.s32.totalorder %v181, %v220
  %vm239 = vcmp.eq.s32.totalorder %v181, %v223
  %vm240 = vcmp.eq.s32.totalorder %v181, %v226
  %vm241 = vcmp.eq.s32.totalorder %v181, %v229
  %v242 = vsel %vm230, 1.0, 0.0
  %v243 = vsel %vm231, 1.0, 0.0
  %v244 = vsel %vm232, 1.0, 0.0
  %v245 = vsel %vm233, 1.0, 0.0
  %v246 = vsel %vm234, 1.0, 0.0
  %v247 = vsel %vm235, 1.0, 0.0
  %v248 = vsel %vm236, 1.0, 0.0
  %v249 = vsel %vm237, 1.0, 0.0
  %v250 = vsel %vm238, 1.0, 0.0
  %v251 = vsel %vm239, 1.0, 0.0
  %v252 = vsel %vm240, 1.0, 0.0
  %v253 = vsel %vm241, 1.0, 0.0
  %v254 = vpack.c.bf16 %v243, %v242
  %v255 = vpack.c.bf16 %v245, %v244
  %v256 = vpack.c.bf16 %v247, %v246
  %v257 = vpack.c.bf16 %v249, %v248
  %v258 = vpack.c.bf16 %v251, %v250
  %v259 = vpack.c.bf16 %v253, %v252
  %v260 = vpack.c.bf16 %v177, %v176
  %v261 = vpack.c.bf16 %v179, %v178
  %v263 = vsel %vm89, %v254, 0
  %v266 = vsel %vm89, %v255, 0
  %v269 = vsel %vm89, %v256, 0
  %v272 = vsel %vm89, %v257, 0
  %v275 = vsel %vm89, %v258, 0
  %v278 = vsel %vm89, %v259, 0
  %280 = vmatpush.bf16.msra.mxu0 0
  %281 = vmatpush.bf16.msra.mxu0 0
  %282 = vmatpush.bf16.msra.mxu0 0
  %283 = vmatpush.bf16.msra.mxu0 0
  %284 = vmatpush.bf16.msra.mxu0 0
  %285 = vmatpush.bf16.msra.mxu0 0
  %286 = vmatpush.bf16.msra.mxu0 %v261
  %287 = vmatpush.bf16.msra.mxu0 %v260
  %288 = vmatmul.bf16.gmra.mxu0 %v263
  %v289 = vpop.f32.mrf.mxu0
  %v290 = vadd.f32 0.0, %v289
  %v291 = vpop.f32.mrf.mxu0
  %v292 = vadd.f32 0.0, %v291
  %293 = vmatmul.bf16.gmra.mxu0 %v266
  %v294 = vpop.f32.mrf.mxu0
  %v295 = vadd.f32 0.0, %v294
  %v296 = vpop.f32.mrf.mxu0
  %v297 = vadd.f32 0.0, %v296
  %298 = vmatmul.bf16.gmra.mxu0 %v269
  %v299 = vpop.f32.mrf.mxu0
  %v300 = vadd.f32 0.0, %v299
  %v301 = vpop.f32.mrf.mxu0
  %v302 = vadd.f32 0.0, %v301
  %303 = vmatmul.bf16.gmra.mxu0 %v272
  %v304 = vpop.f32.mrf.mxu0
  %v305 = vadd.f32 0.0, %v304
  %v306 = vpop.f32.mrf.mxu0
  %v307 = vadd.f32 0.0, %v306
  %308 = vmatmul.bf16.gmra.mxu0 %v275
  %v309 = vpop.f32.mrf.mxu0
  %v310 = vadd.f32 0.0, %v309
  %v311 = vpop.f32.mrf.mxu0
  %v312 = vadd.f32 0.0, %v311
  %313 = vmatmul.bf16.gmra.mxu0 %v278
  %v314 = vpop.f32.mrf.mxu0
  %v315 = vadd.f32 0.0, %v314
  %v316 = vpop.f32.mrf.mxu0
  %v317 = vadd.f32 0.0, %v316
  %318 = vdwg.mxu0
  %v319 = vmul.f32 %v290, %v305
  %v320 = vmul.f32 %v292, %v307
  %v321 = vmul.f32 %v295, %v310
  %v322 = vmul.f32 %v297, %v312
  %v323 = vmul.f32 %v300, %v315
  %v324 = vmul.f32 %v302, %v317
  %v325 = vld [vmem:[%s6] sm:$0x3]
  %v326 = vpack.c.bf16 %v320, %v319
  %v327 = vpack.c.bf16 %v322, %v321
  %v328 = vpack.c.bf16 %v324, %v323
  %v329 = vld [vmem:[%s4] sm:$0xf]
  %v330 = vld [vmem:[%s4 + $0x4] sm:$0xf]
  %v331 = vperm.slane %v325, 0
  %v334 = vunpack.c.l.b16 %v329
  %v335 = vunpack.c.l.b16 %v330
  %v336 = vpack.c.b16 %v335, %v334
  %v339 = vsel %vm51, %v326, 0
  %v342 = vsel %vm51, %v327, 0
  %v345 = vsel %vm51, %v328, 0
  %347 = vmatpush.bf16.msra.mxu0 0
  %348 = vmatpush.bf16.msra.mxu0 0
  %349 = vmatpush.bf16.msra.mxu0 0
  %350 = vmatpush.bf16.msra.mxu0 0
  %351 = vmatpush.bf16.msra.mxu0 0
  %352 = vmatpush.bf16.msra.mxu0 0
  %353 = vmatpush.bf16.msra.mxu0 0
  %354 = vmatpush.bf16.msra.mxu0 %v336
  %355 = vmatmul.bf16.gmra.mxu0 %v339
  %v356 = vpop.f32.mrf.mxu0
  %v357 = vadd.f32 %v331, %v356
  %v358 = vpop.f32.mrf.mxu0
  %v359 = vadd.f32 %v331, %v358
  %360 = vmatmul.bf16.gmra.mxu0 %v342
  %v361 = vpop.f32.mrf.mxu0
  %v362 = vadd.f32 %v331, %v361
  %v363 = vpop.f32.mrf.mxu0
  %v364 = vadd.f32 %v331, %v363
  %365 = vmatmul.bf16.gmra.mxu0 %v345
  %v366 = vpop.f32.mrf.mxu0
  %v367 = vadd.f32 %v331, %v366
  %v368 = vpop.f32.mrf.mxu0
  %v369 = vadd.f32 %v331, %v368
  %370 = vdwg.mxu0
  %v371 = vmax.f32 %v357, 0.0
  %v372 = vmax.f32 %v359, 0.0
  %v373 = vmax.f32 %v362, 0.0
  %v374 = vmax.f32 %v364, 0.0
  %v375 = vmax.f32 %v367, 0.0
  %v376 = vmax.f32 %v369, 0.0
  %v377 = vpack.c.bf16 %v372, %v371
  %v378 = vpack.c.bf16 %v374, %v373
  %v379 = vpack.c.bf16 %v376, %v375
  %v380 = vld [vmem:[%s5] sm:$0xf]
  %v381 = vld [vmem:[%s5 + $0x4] sm:$0xf]
  %v382 = vld [vmem:[%s5 + $0x8] sm:$0xf]
  %v383 = vld [vmem:[%s5 + $0xc] sm:$0xf]
  %v384 = vperm.slane %v325, 1
  %v389 = vunpack.c.l.b16 %v380
  %v390 = vunpack.c.l.b16 %v381
  %v391 = vunpack.c.l.b16 %v382
  %v392 = vunpack.c.l.b16 %v383
  %v393 = vpack.c.b16 %v390, %v389
  %v394 = vpack.c.b16 %v392, %v391
  %v398 = vsel %vm89, %v377, 0
  %v401 = vsel %vm89, %v378, 0
  %v404 = vsel %vm89, %v379, 0
  %406 = vmatpush.bf16.msra.mxu0 0
  %407 = vmatpush.bf16.msra.mxu0 0
  %408 = vmatpush.bf16.msra.mxu0 0
  %409 = vmatpush.bf16.msra.mxu0 0
  %410 = vmatpush.bf16.msra.mxu0 0
  %411 = vmatpush.bf16.msra.mxu0 0
  %412 = vmatpush.bf16.msra.mxu0 %v394
  %413 = vmatpush.bf16.msra.mxu0 %v393
  %414 = vmatmul.bf16.gmra.mxu0 %v398
  %v415 = vpop.f32.mrf.mxu0
  %v416 = vadd.f32 %v384, %v415
  %v417 = vpop.f32.mrf.mxu0
  %v418 = vadd.f32 %v384, %v417
  %419 = vmatmul.bf16.gmra.mxu0 %v401
  %v420 = vpop.f32.mrf.mxu0
  %v421 = vadd.f32 %v384, %v420
  %v422 = vpop.f32.mrf.mxu0
  %v423 = vadd.f32 %v384, %v422
  %424 = vmatmul.bf16.gmra.mxu0 %v404
  %v425 = vpop.f32.mrf.mxu0
  %v426 = vadd.f32 %v384, %v425
  %v427 = vpop.f32.mrf.mxu0
  %v428 = vadd.f32 %v384, %v427
  %429 = vdwg.mxu0
  %v430 = vmax.f32 %v416, 0.0
  %v431 = vmax.f32 %v418, 0.0
  %v432 = vmax.f32 %v421, 0.0
  %v433 = vmax.f32 %v423, 0.0
  %v434 = vmax.f32 %v426, 0.0
  %v435 = vmax.f32 %v428, 0.0
  %v436 = vpack.c.bf16 %v431, %v430
  %v437 = vpack.c.bf16 %v433, %v432
  %v438 = vpack.c.bf16 %v435, %v434
  %v439 = vld [vmem:[%s7] sm:$0xf]
  %v440 = vld [vmem:[%s7 + $0x4] sm:$0xf]
  %v441 = vld [vmem:[%s7 + $0x8] sm:$0xf]
  %v442 = vld [vmem:[%s7 + $0xc] sm:$0xf]
  %v443 = vld [vmem:[%s8] sm:$0x1]
  %v445 = vperm.slane %v443, 0
  %v451 = vunpack.c.l.b16 %v439
  %v452 = vunpack.c.l.b16 %v440
  %v453 = vunpack.c.l.b16 %v441
  %v454 = vunpack.c.l.b16 %v442
  %v455 = vpack.c.b16 %v452, %v451
  %v456 = vpack.c.b16 %v454, %v453
  %v460 = vsel %vm89, %v436, 0
  %v463 = vsel %vm89, %v437, 0
  %v466 = vsel %vm89, %v438, 0
  %468 = vmatpush.bf16.msra.mxu0 0
  %469 = vmatpush.bf16.msra.mxu0 0
  %470 = vmatpush.bf16.msra.mxu0 0
  %471 = vmatpush.bf16.msra.mxu0 0
  %472 = vmatpush.bf16.msra.mxu0 0
  %473 = vmatpush.bf16.msra.mxu0 0
  %474 = vmatpush.bf16.msra.mxu0 %v456
  %475 = vmatpush.bf16.msra.mxu0 %v455
  %476 = vmatmul.bf16.gmra.mxu0 %v460
  %v477 = vpop.f32.mrf.mxu0
  %v478 = vadd.f32 %v445, %v477
  %v479 = vpop.f32.mrf.mxu0
  %v480 = vadd.f32 %v445, %v479
  %481 = vmatmul.bf16.gmra.mxu0 %v463
  %v482 = vpop.f32.mrf.mxu0
  %v483 = vadd.f32 %v445, %v482
  %v484 = vpop.f32.mrf.mxu0
  %v485 = vadd.f32 %v445, %v484
  %486 = vmatmul.bf16.gmra.mxu0 %v466
  %v487 = vpop.f32.mrf.mxu0
  %v488 = vadd.f32 %v445, %v487
  %v489 = vpop.f32.mrf.mxu0
  %v490 = vadd.f32 %v445, %v489
  %491 = vdwg.mxu0
  %vm492 = vcmask 31744
  %v493 = vsel %vm492, %v478, -inf
  %494 = vmax.xlane.f32.xlu0 %v493
  %v495 = vpop.xlane.xlu0 %494
  %v496 = vsel %vm492, %v480, -inf
  %497 = vmax.xlane.f32.xlu0 %v496
  %v498 = vpop.xlane.xlu0 %497
  %v499 = vsel %vm492, %v483, -inf
  %500 = vmax.xlane.f32.xlu0 %v499
  %v501 = vpop.xlane.xlu0 %500
  %v502 = vsel %vm492, %v485, -inf
  %503 = vmax.xlane.f32.xlu0 %v502
  %v504 = vpop.xlane.xlu0 %503
  %v505 = vsel %vm492, %v488, -inf
  %506 = vmax.xlane.f32.xlu0 %v505
  %v507 = vpop.xlane.xlu0 %506
  %v508 = vsel %vm492, %v490, -inf
  %509 = vmax.xlane.f32.xlu0 %v508
  %v510 = vpop.xlane.xlu0 %509
  %v511 = vsub.f32 %v478, %v495
  %v512 = vsub.f32 %v480, %v498
  %v513 = vsub.f32 %v483, %v501
  %v514 = vsub.f32 %v485, %v504
  %v515 = vsub.f32 %v488, %v507
  %v516 = vsub.f32 %v490, %v510
  %v517 = vmul.f32 %v511, 1.442695
  %v518 = vpow.pop %v517
  %v519 = vmul.f32 %v512, 1.442695
  %v520 = vpow.pop %v519
  %v521 = vmul.f32 %v513, 1.442695
  %v522 = vpow.pop %v521
  %v523 = vmul.f32 %v514, 1.442695
  %v524 = vpow.pop %v523
  %v525 = vmul.f32 %v515, 1.442695
  %v526 = vpow.pop %v525
  %v527 = vmul.f32 %v516, 1.442695
  %v528 = vpow.pop %v527
  %v529 = vsel %vm492, %v518, 0.0
  %530 = vadd.xlane.f32.xlu0 %v529
  %v531 = vpop.xlane.xlu0 %530
  %v532 = vsel %vm492, %v520, 0.0
  %533 = vadd.xlane.f32.xlu0 %v532
  %v534 = vpop.xlane.xlu0 %533
  %v535 = vsel %vm492, %v522, 0.0
  %536 = vadd.xlane.f32.xlu0 %v535
  %v537 = vpop.xlane.xlu0 %536
  %v538 = vsel %vm492, %v524, 0.0
  %539 = vadd.xlane.f32.xlu0 %v538
  %v540 = vpop.xlane.xlu0 %539
  %v541 = vsel %vm492, %v526, 0.0
  %542 = vadd.xlane.f32.xlu0 %v541
  %v543 = vpop.xlane.xlu0 %542
  %v544 = vsel %vm492, %v528, 0.0
  %545 = vadd.xlane.f32.xlu0 %v544
  %v546 = vpop.xlane.xlu0 %545
  %v547 = vlog2.pop %v531
  %v548 = vmul.f32 %v547, 0.6931472
  %v549 = vlog2.pop %v534
  %v550 = vmul.f32 %v549, 0.6931472
  %v551 = vlog2.pop %v537
  %v552 = vmul.f32 %v551, 0.6931472
  %v553 = vlog2.pop %v540
  %v554 = vmul.f32 %v553, 0.6931472
  %v555 = vlog2.pop %v543
  %v556 = vmul.f32 %v555, 0.6931472
  %v557 = vlog2.pop %v546
  %v558 = vmul.f32 %v557, 0.6931472
  %v559 = vsub.f32 %v511, %v548
  %v560 = vsub.f32 %v512, %v550
  %v561 = vsub.f32 %v513, %v552
  %v562 = vsub.f32 %v514, %v554
  %v563 = vsub.f32 %v515, %v556
  %v564 = vsub.f32 %v516, %v558
  %565 = vst.msk [vmem:[%s9] sm:$0xff] %vm492, %v559
  %566 = vst.msk [vmem:[%s9 + $0x8] sm:$0xff] %vm492, %v560
  %567 = vst.msk [vmem:[%s9 + $0x10] sm:$0xff] %vm492, %v561
  %568 = vst.msk [vmem:[%s9 + $0x18] sm:$0xff] %vm492, %v562
  %569 = vst.msk [vmem:[%s9 + $0x20] sm:$0xff] %vm492, %v563
  %570 = vst.msk [vmem:[%s9 + $0x28] sm:$0xff] %vm492, %v564
  // Predicated region
  $region38: #{gcn_edge_classifier_forward.1} parent=0 // pred_check
    _
  $region39: #{gcn_edge_classifier_forward.1} parent=0 // pred_check_branch
    %572 = sbr.rel (0) target = $region41
  $region40: #{gcn_edge_classifier_forward.1} parent=0 // pred_region
    _
  $region41: #{gcn_edge_classifier_forward.1} parent=0 // pred_fallthru
    _
  // Predicated region
  $region42: #{gcn_edge_classifier_forward.1} parent=0 // pred_check
    _
  $region43: #{gcn_edge_classifier_forward.1} parent=0 // pred_check_branch
    %574 = sbr.rel (0) target = $region45
  $region44: #{gcn_edge_classifier_forward.1} parent=0 // pred_region
    _
  $region45: #{gcn_edge_classifier_forward.1} parent=0 // pred_fallthru
    _

</llo_original>
